<compile_context>
chip_gen: v6e
topology: v6e:2x2x1
jax: 0.10.0
libtpu: 0.0.40
codegen_flags: <defaults>
</compile_context>

<pallas_src>
from functools import partial

import jax
import jax.numpy as jnp
from jax.experimental import pallas as pl
from jax.experimental.pallas import tpu as pltpu


# ----------------------------- kernels ------------------------------------ #

def wh_kernel(h_ref, wl_ref, wr_ref, whl_ref, whr_ref, *, slope):
    # h_ref: (1, N, F_in); wl_ref/wr_ref: (F_in, H*D); outputs: (1, N, H*D)
    h = h_ref[0]                                                        # (N, F_in)
    wl = jnp.dot(h, wl_ref[...], preferred_element_type=jnp.float32)   # (N, HD)
    wr = jnp.dot(h, wr_ref[...], preferred_element_type=jnp.float32)   # (N, HD)
    # LeakyReLU fused here (elementwise, commutes with the head-view reshape).
    whl_ref[0] = jnp.where(wl > 0, wl, slope * wl)
    whr_ref[0] = jnp.where(wr > 0, wr, slope * wr)


def attn_kernel(whl_ref, whr_ref, adj_ref, a_ref, out_ref):
    # whl_ref/whr_ref: (1, H, N, D) already LeakyReLU'd (torch-viewed layout)
    # adj_ref: (1, N, N)   a_ref: (1, D)   out_ref: (1, H, N, D)
    whl = whl_ref[0]                                     # (H, N, D)
    whr = whr_ref[0]                                     # (H, N, D)
    adj = adj_ref[0]                                     # (N, N)  -- loaded once per batch
    av = a_ref[...]                                      # (1, D)

    # attention logits: e[h,i,j] = (Wh_l[h,i].a) + (Wh_r[h,j].a)
    sl = jnp.sum(whl * av, axis=-1, keepdims=True)       # (H, N, 1)  VPU mul + lane reduce
    sr = jnp.sum(whr * av, axis=-1, keepdims=True)       # (H, N, 1)
    e = sl + jnp.swapaxes(sr, 1, 2)                      # (H, N, N)

    # mask non-edges with -9e15, numerically-stable softmax over neighbors j
    att = jnp.where(adj > 0, e, -9000000000000000.0)
    att = att - jnp.max(att, axis=-1, keepdims=True)
    p = jnp.exp(att)
    inv = pl.reciprocal(jnp.sum(p, axis=-1, keepdims=True), approx=True)  # EUP
    att = p * inv

    # aggregate neighbors with Wh_r (all heads at once), then ELU(1.0)
    hp = jnp.einsum('hij,hjd->hid', att, whr,
                    preferred_element_type=jnp.float32)  # (H, N, D)
    out_ref[0] = jnp.where(hp > 0, hp, jnp.exp(hp) - 1.0)


# ----------------------------- wrapper ------------------------------------ #

def gat_v2_forward(x, adj, W_l, W_r, a, n_heads,
                   leaky_relu_slope=0.2, directed=True):
    B, N, F_in = x.shape
    HD = W_l.shape[1]
    D = HD // n_heads

    if not directed:
        # only the >0 mask is consumed downstream, so symmetrizing suffices
        adj = adj + jnp.swapaxes(adj, 1, 2)

    # --- kernel 1: Wh_l / Wh_r = LeakyReLU(x @ W_{l,r}), one grid step per batch
    whl_flat, whr_flat = pl.pallas_call(
        partial(wh_kernel, slope=leaky_relu_slope),
        out_shape=(jax.ShapeDtypeStruct((B, N, HD), jnp.float32),
                   jax.ShapeDtypeStruct((B, N, HD), jnp.float32)),
        grid=(B,),
        in_specs=[
            pl.BlockSpec((1, N, F_in), lambda b: (b, 0, 0)),
            pl.BlockSpec((F_in, HD), lambda b: (0, 0)),
            pl.BlockSpec((F_in, HD), lambda b: (0, 0)),
        ],
        out_specs=(pl.BlockSpec((1, N, HD), lambda b: (b, 0, 0)),
                   pl.BlockSpec((1, N, HD), lambda b: (b, 0, 0))),
        compiler_params=pltpu.CompilerParams(
            dimension_semantics=("parallel",)),
    )(x, W_l, W_r)

    # torch: Wh.view(-1, H, N, D) on contiguous (B, N, H*D) == row-major reshape
    # (pure metadata/bitcast in XLA; the only glue between the two kernels)
    whl = whl_flat.reshape(B, n_heads, N, D)
    whr = whr_flat.reshape(B, n_heads, N, D)
    a_row = a.reshape(1, D)   # (n_hidden, 1) -> (1, n_hidden)

    # --- kernel 2: per-batch attention over ALL heads + aggregation + ELU ----
    out = pl.pallas_call(
        attn_kernel,
        out_shape=jax.ShapeDtypeStruct((B, n_heads, N, D), jnp.float32),
        grid=(B,),
        in_specs=[
            pl.BlockSpec((1, n_heads, N, D), lambda b: (b, 0, 0, 0)),
            pl.BlockSpec((1, n_heads, N, D), lambda b: (b, 0, 0, 0)),
            pl.BlockSpec((1, N, N), lambda b: (b, 0, 0)),
            pl.BlockSpec((1, D), lambda b: (0, 0)),
        ],
        out_specs=pl.BlockSpec((1, n_heads, N, D), lambda b: (b, 0, 0, 0)),
        compiler_params=pltpu.CompilerParams(
            dimension_semantics=("parallel",)),
    )(whl, whr, adj, a_row)

    # torch: h_prime.view(-1, N, out_features) on contiguous (B, H, N, D)
    return out.reshape(B, N, HD)


# --------------------------- reference (pure JAX) -------------------------- #

def gat_v2_reference(x, adj, W_l, W_r, a, n_heads, slope=0.2, directed=True):
    B, N, _ = x.shape
    HD = W_l.shape[1]
    D = HD // n_heads
    if not directed:
        adj = adj + jnp.swapaxes(adj, 1, 2)
        adj = jnp.where(adj > 0, jnp.ones_like(adj), jnp.zeros_like(adj))
    whl = (x @ W_l).reshape(B, n_heads, N, D)
    whr = (x @ W_r).reshape(B, n_heads, N, D)
    whl = jnp.where(whl > 0, whl, slope * whl)
    whr = jnp.where(whr > 0, whr, slope * whr)
    e = whl @ a + jnp.swapaxes(whr @ a, 2, 3)                 # (B,H,N,N)
    att = jnp.where(adj[:, None, :, :] > 0, e, -9e15 * jnp.ones_like(e))
    att = jax.nn.softmax(att, axis=-1)
    hp = (att @ whr).reshape(B, N, HD)
    return jnp.where(hp > 0, hp, jnp.exp(hp) - 1.0)


# --------------------------------- main ------------------------------------ #

if __name__ == "__main__":
    B, N = 2, 8
    in_features, out_features, n_heads = 16, 32, 8
    n_hidden = out_features // n_heads   # 4

    key = jax.random.PRNGKey(0)
    kx, kadj, kwl, kwr, ka = jax.random.split(key, 5)

    # Deterministic xavier_uniform(gain=1.414)-style init, same parameter shapes
    gain = 1.414
    lim_w = gain * (6.0 / (in_features + n_hidden * n_heads)) ** 0.5
    lim_a = gain * (6.0 / (n_hidden + 1)) ** 0.5
    W_l = jax.random.uniform(kwl, (in_features, n_hidden * n_heads), jnp.float32,
                             -lim_w, lim_w)
    W_r = jax.random.uniform(kwr, (in_features, n_hidden * n_heads), jnp.float32,
                             -lim_w, lim_w)
    a = jax.random.uniform(ka, (n_hidden, 1), jnp.float32, -lim_a, lim_a)

    x = jax.random.normal(kx, (B, N, in_features), jnp.float32)
    adj = jax.random.bernoulli(kadj, 0.4, (B, N, N)).astype(jnp.float32)

    out = gat_v2_forward(x, adj, W_l, W_r, a, n_heads)
    out = jax.block_until_ready(out)

    ref = gat_v2_reference(x, adj, W_l, W_r, a, n_heads)
    assert out.shape == (B, N, out_features)
    assert jnp.allclose(out, ref, rtol=1e-2, atol=1e-2), "mismatch vs reference"

    print("KERNEL_OK")
</pallas_src>

<mosaic_0001>
module attributes {stable_mosaic.version = 11 : i64} {
  func.func @wh_kernel(%arg0: i32, %arg1: memref<1x8x16xf32, #tpu.memory_space<vmem>>, %arg2: memref<16x32xf32, #tpu.memory_space<vmem>>, %arg3: memref<16x32xf32, #tpu.memory_space<vmem>>, %arg4: memref<1x8x32xf32, #tpu.memory_space<vmem>>, %arg5: memref<1x8x32xf32, #tpu.memory_space<vmem>>) attributes {dimension_semantics = [#tpu.dimension_semantics<parallel>], iteration_bounds = array<i64: 2>, scalar_prefetch = 0 : i64, scratch_operands = 0 : i64, tpu.core_type = #tpu.core_type<tc>, window_params = [{transform_indices = @transform_0, window_bounds = array<i64: 1, 8, 16>}, {pipeline_mode = #tpu.pipeline_mode<synchronous>, transform_indices = @transform_1, window_bounds = array<i64: 16, 32>}, {pipeline_mode = #tpu.pipeline_mode<synchronous>, transform_indices = @transform_2, window_bounds = array<i64: 16, 32>}, {transform_indices = @transform_3, window_bounds = array<i64: 1, 8, 32>}, {transform_indices = @transform_4, window_bounds = array<i64: 1, 8, 32>}]} {
    %c0 = arith.constant 0 : index
    %c0_0 = arith.constant 0 : index
    %c0_1 = arith.constant 0 : index
    %0 = vector.load %arg1[%c0, %c0_0, %c0_1] : memref<1x8x16xf32, #tpu.memory_space<vmem>>, vector<1x8x16xf32>
    %1 = vector.shape_cast %0 : vector<1x8x16xf32> to vector<8x16xf32>
    %c0_2 = arith.constant 0 : index
    %c0_3 = arith.constant 0 : index
    %2 = vector.load %arg2[%c0_2, %c0_3] : memref<16x32xf32, #tpu.memory_space<vmem>>, vector<16x32xf32>
    %cst = arith.constant dense<0.000000e+00> : vector<8x32xf32>
    %3 = tpu.matmul %1, %2, %cst {dimension_numbers = #tpu.dot_dimension_numbers<[1], [0], [0], [1], [0, 0, 1, 1], [], []>} : vector<8x16xf32>, vector<16x32xf32>, vector<8x32xf32> -> vector<8x32xf32>
    %c0_4 = arith.constant 0 : index
    %c0_5 = arith.constant 0 : index
    %4 = vector.load %arg3[%c0_4, %c0_5] : memref<16x32xf32, #tpu.memory_space<vmem>>, vector<16x32xf32>
    %cst_6 = arith.constant dense<0.000000e+00> : vector<8x32xf32>
    %5 = tpu.matmul %1, %4, %cst_6 {dimension_numbers = #tpu.dot_dimension_numbers<[1], [0], [0], [1], [0, 0, 1, 1], [], []>} : vector<8x16xf32>, vector<16x32xf32>, vector<8x32xf32> -> vector<8x32xf32>
    %cst_7 = arith.constant 0.000000e+00 : f32
    %6 = vector.broadcast %cst_7 : f32 to vector<8x32xf32>
    %7 = arith.cmpf ogt, %3, %6 : vector<8x32xf32>
    %cst_8 = arith.constant 2.000000e-01 : f32
    %8 = vector.broadcast %cst_8 : f32 to vector<8x32xf32>
    %9 = arith.mulf %8, %3 : vector<8x32xf32>
    %10 = arith.select %7, %3, %9 : vector<8x32xi1>, vector<8x32xf32>
    %c0_9 = arith.constant 0 : index
    %c0_10 = arith.constant 0 : index
    %c0_11 = arith.constant 0 : index
    %11 = vector.load %arg4[%c0_9, %c0_10, %c0_11] : memref<1x8x32xf32, #tpu.memory_space<vmem>>, vector<1x8x32xf32>
    %12 = vector.shape_cast %11 : vector<1x8x32xf32> to vector<8x32xf32>
    %13 = vector.shape_cast %10 : vector<8x32xf32> to vector<1x8x32xf32>
    tpu.vector_store %arg4[%c0_9, %c0_10, %c0_11], %13 {strides = array<i32>} : memref<1x8x32xf32, #tpu.memory_space<vmem>>, vector<1x8x32xf32>,
    %cst_12 = arith.constant 0.000000e+00 : f32
    %14 = vector.broadcast %cst_12 : f32 to vector<8x32xf32>
    %15 = arith.cmpf ogt, %5, %14 : vector<8x32xf32>
    %cst_13 = arith.constant 2.000000e-01 : f32
    %16 = vector.broadcast %cst_13 : f32 to vector<8x32xf32>
    %17 = arith.mulf %16, %5 : vector<8x32xf32>
    %18 = arith.select %15, %5, %17 : vector<8x32xi1>, vector<8x32xf32>
    %c0_14 = arith.constant 0 : index
    %c0_15 = arith.constant 0 : index
    %c0_16 = arith.constant 0 : index
    %19 = vector.load %arg5[%c0_14, %c0_15, %c0_16] : memref<1x8x32xf32, #tpu.memory_space<vmem>>, vector<1x8x32xf32>
    %20 = vector.shape_cast %19 : vector<1x8x32xf32> to vector<8x32xf32>
    %21 = vector.shape_cast %18 : vector<8x32xf32> to vector<1x8x32xf32>
    tpu.vector_store %arg5[%c0_14, %c0_15, %c0_16], %21 {strides = array<i32>} : memref<1x8x32xf32, #tpu.memory_space<vmem>>, vector<1x8x32xf32>,
    return
  }
  func.func @transform_0(%arg0: i32) -> (i32, i32, i32) {
    %c0_i32 = arith.constant 0 : i32
    %c0_i32_0 = arith.constant 0 : i32
    %c0_i32_1 = arith.constant 0 : i32
    return %arg0, %c0_i32, %c0_i32_0 : i32, i32, i32
  }
  func.func @transform_1(%arg0: i32) -> (i32, i32) {
    %c0_i32 = arith.constant 0 : i32
    %c0_i32_0 = arith.constant 0 : i32
    %c0_i32_1 = arith.constant 0 : i32
    return %c0_i32, %c0_i32_0 : i32, i32
  }
  func.func @transform_2(%arg0: i32) -> (i32, i32) {
    %c0_i32 = arith.constant 0 : i32
    %c0_i32_0 = arith.constant 0 : i32
    %c0_i32_1 = arith.constant 0 : i32
    return %c0_i32, %c0_i32_0 : i32, i32
  }
  func.func @transform_3(%arg0: i32) -> (i32, i32, i32) {
    %c0_i32 = arith.constant 0 : i32
    %c0_i32_0 = arith.constant 0 : i32
    %c0_i32_1 = arith.constant 0 : i32
    return %arg0, %c0_i32, %c0_i32_0 : i32, i32, i32
  }
  func.func @transform_4(%arg0: i32) -> (i32, i32, i32) {
    %c0_i32 = arith.constant 0 : i32
    %c0_i32_0 = arith.constant 0 : i32
    %c0_i32_1 = arith.constant 0 : i32
    return %arg0, %c0_i32, %c0_i32_0 : i32, i32, i32
  }
}

</mosaic_0001>

<llo_original>
// kernel: tpu_custom_call.1
$region0: #{tpu_custom_call.1}
  #allocation0 [shape = 'u32[]', space=smem, size = 0x4, offset = 0x4, fixed_abs, tag = 'smem constant byte address 0x4 - core index']
  #allocation1 [shape = 'u32[144,128]{1,0:T(1,128)}', space=vmem, size = 0x12000, scoped, tag = 'internal scratch']
  %s0 = inlined_call_operand.hbm [shape: f32[2,8,16], index: 0, kind: input, shape index: {}]
  %s1 = inlined_call_operand.hbm [shape: f32[16,32], index: 1, kind: input, shape index: {}]
  %s2 = inlined_call_operand.hbm [shape: f32[16,32], index: 2, kind: input, shape index: {}]
  %s3 = inlined_call_operand.hbm [shape: f32[2,8,32], index: 3, kind: output, shape index: {0}]
  %s4 = inlined_call_operand.hbm [shape: f32[2,8,32], index: 4, kind: output, shape index: {1}]
  %5 = xla_tuple %s3, %s4
  %s6 = sld [smem:[#allocation0]]
  $region65: #{tpu_custom_call.1} parent=0
    _
  %s8 = ssub.s32 1, %s6
  %s9 = scalar_select 0, %s8, %s6
  $region1: #{tpu_custom_call.1} parent=0
    #allocation2 [shape = 'u8[8192]{0}', space=vmem, size = 0x2000, scoped, tag = 'input window, operand 0']
    #allocation3 [shape = 's32[2]{0}', space=sflag, size = 0x8, scoped, tag = 'scoped memory for tpu_custom_call.1']
    #allocation4 [shape = 's32[2]{0}', space=sflag, size = 0x8, scoped, tag = 'scoped memory for tpu_custom_call.1']
    #allocation5 [shape = 'u8[8192]{0}', space=vmem, size = 0x2000, scoped, tag = 'input window, operand 1, single buffered']
    #allocation6 [shape = 's32[1]{0}', space=sflag, size = 0x4, scoped, tag = 'scoped memory for tpu_custom_call.1']
    #allocation7 [shape = 'u8[8192]{0}', space=vmem, size = 0x2000, scoped, tag = 'input window, operand 2, single buffered']
    #allocation8 [shape = 'u8[8192]{0}', space=vmem, size = 0x2000, scoped, tag = 'output window, operand 0']
    #allocation9 [shape = 'u8[8192]{0}', space=vmem, size = 0x2000, scoped, tag = 'output window, operand 1']
    #allocation10 [shape = 's32[2]{0}', space=sflag, size = 0x8, scoped, tag = 'scoped memory for tpu_custom_call.1']
    %10 = vsyncpa [#allocation3], 0
    %s11 = scalar_lea.sflag [#allocation3], 1
    %12 = vsyncpa %s11, 0
    %13 = vsyncpa [#allocation6], 0
    %14 = vsyncpa [#allocation4], 0
    %s15 = scalar_lea.sflag [#allocation4], 1
    %16 = vsyncpa %s15, 0
    %17 = vsyncpa [#allocation10], 0
    %s18 = scalar_lea.sflag [#allocation10], 1
    %19 = vsyncpa %s18, 0
    loop: start=0, step=1, limit=4
    $region2: #{tpu_custom_call.1} parent=1 // loop_pre_header
      _
    $region3: #{tpu_custom_call.1} parent=1 // loop_header
      %s21 = sphi 0, %s25
      %p22 = scmp.ge.s32.totalorder %s21, 4
      %s31 = sphi 0, %s33
      %s34 = sphi 0, %s31
      %s35 = sphi 0, %s34
      %s51 = sphi 0, %s35
      %s55 = sphi 0, %s55
      %s57 = sphi 0, %s55
      %s58 = sphi 0, %s57
      %s72 = sphi 0, %s58
      %s76 = sphi 0, %s76
      %s78 = sphi 0, %s76
      %s79 = sphi 0, %s78
      %s93 = sphi 0, %s79
      %s99 = sphi 0, %s101
      %s102 = sphi 0, %s99
      %s103 = sphi 0, %s102
      %s119 = sphi 0, %s103
      %s125 = sphi 0, %s127
      %s128 = sphi 0, %s125
      %s129 = sphi 0, %s128
      %s145 = sphi 0, %s129
    $region4: #{tpu_custom_call.1} parent=1 // loop_header_branch
      %24 = sbr.rel (%p22) target = $region8
    $region5: #{tpu_custom_call.1} parent=1 // loop_body
      %s26 = ssub.s32 %s21, 1
      %s27 = ssub.s32 %s21, 2
      %s28 = sadd.s32 %s21, 1
      %s29 = ssub.s32 %s21, %s28
      %p30 = scmp.eq.s32.totalorder %s29, 0
      %s32 = sadd.s32 %s31, 1
      %s33 = scalar_select %p30, %s31, %s32
      %p36 = pneg %p30
      %p37 = scmp.eq.s32.totalorder %s21, 1
      %p38 = por %p36, %p37
      %p39 = scmp.ne.s32.totalorder %s31, %s34
      %p40 = scmp.eq.s32.totalorder %s21, 0
      %p41 = por %p39, %p40
      %p42 = scmp.ne.s32.totalorder %s31, %s34
      %p43 = scmp.eq.s32.totalorder %s26, 1
      %p44 = por %p42, %p43
      %p45 = scmp.ne.s32.totalorder %s34, %s35
      %p46 = scmp.eq.s32.totalorder %s26, 0
      %p47 = por %p45, %p46
      %p48 = scmp.ne.s32.totalorder %s34, %s35
      %p49 = scmp.eq.s32.totalorder %s27, 1
      %p50 = por %p48, %p49
      %p52 = scmp.ne.s32.totalorder %s35, %s51
      %p53 = scmp.eq.s32.totalorder %s27, 0
      %p54 = por %p52, %p53
      %s56 = sadd.s32 %s55, 1
      %p59 = scmp.eq.s32.totalorder %s21, 1
      %p60 = scmp.ne.s32.totalorder %s55, %s57
      %p61 = scmp.eq.s32.totalorder %s21, 0
      %p62 = por %p60, %p61
      %p63 = scmp.ne.s32.totalorder %s55, %s57
      %p64 = scmp.eq.s32.totalorder %s26, 1
      %p65 = por %p63, %p64
      %p66 = scmp.ne.s32.totalorder %s57, %s58
      %p67 = scmp.eq.s32.totalorder %s26, 0
      %p68 = por %p66, %p67
      %p69 = scmp.ne.s32.totalorder %s57, %s58
      %p70 = scmp.eq.s32.totalorder %s27, 1
      %p71 = por %p69, %p70
      %p73 = scmp.ne.s32.totalorder %s58, %s72
      %p74 = scmp.eq.s32.totalorder %s27, 0
      %p75 = por %p73, %p74
      %s77 = sadd.s32 %s76, 1
      %p80 = scmp.eq.s32.totalorder %s21, 1
      %p81 = scmp.ne.s32.totalorder %s76, %s78
      %p82 = scmp.eq.s32.totalorder %s21, 0
      %p83 = por %p81, %p82
      %p84 = scmp.ne.s32.totalorder %s76, %s78
      %p85 = scmp.eq.s32.totalorder %s26, 1
      %p86 = por %p84, %p85
      %p87 = scmp.ne.s32.totalorder %s78, %s79
      %p88 = scmp.eq.s32.totalorder %s26, 0
      %p89 = por %p87, %p88
      %p90 = scmp.ne.s32.totalorder %s78, %s79
      %p91 = scmp.eq.s32.totalorder %s27, 1
      %p92 = por %p90, %p91
      %p94 = scmp.ne.s32.totalorder %s79, %s93
      %p95 = scmp.eq.s32.totalorder %s27, 0
      %p96 = por %p94, %p95
      %s97 = ssub.s32 %s21, %s28
      %p98 = scmp.eq.s32.totalorder %s97, 0
      %s100 = sadd.s32 %s99, 1
      %s101 = scalar_select %p98, %s99, %s100
      %p104 = pneg %p98
      %p105 = scmp.eq.s32.totalorder %s21, 1
      %p106 = por %p104, %p105
      %p107 = scmp.ne.s32.totalorder %s99, %s102
      %p108 = scmp.eq.s32.totalorder %s21, 0
      %p109 = por %p107, %p108
      %p110 = scmp.ne.s32.totalorder %s99, %s102
      %p111 = scmp.eq.s32.totalorder %s26, 1
      %p112 = por %p110, %p111
      %p113 = scmp.ne.s32.totalorder %s102, %s103
      %p114 = scmp.eq.s32.totalorder %s26, 0
      %p115 = por %p113, %p114
      %p116 = scmp.ne.s32.totalorder %s102, %s103
      %p117 = scmp.eq.s32.totalorder %s27, 1
      %p118 = por %p116, %p117
      %p120 = scmp.ne.s32.totalorder %s103, %s119
      %p121 = scmp.eq.s32.totalorder %s27, 0
      %p122 = por %p120, %p121
      %s123 = ssub.s32 %s21, %s28
      %p124 = scmp.eq.s32.totalorder %s123, 0
      %s126 = sadd.s32 %s125, 1
      %s127 = scalar_select %p124, %s125, %s126
      %p130 = pneg %p124
      %p131 = scmp.eq.s32.totalorder %s21, 1
      %p132 = por %p130, %p131
      %p133 = scmp.ne.s32.totalorder %s125, %s128
      %p134 = scmp.eq.s32.totalorder %s21, 0
      %p135 = por %p133, %p134
      %p136 = scmp.ne.s32.totalorder %s125, %s128
      %p137 = scmp.eq.s32.totalorder %s26, 1
      %p138 = por %p136, %p137
      %p139 = scmp.ne.s32.totalorder %s128, %s129
      %p140 = scmp.eq.s32.totalorder %s26, 0
      %p141 = por %p139, %p140
      %p142 = scmp.ne.s32.totalorder %s128, %s129
      %p143 = scmp.eq.s32.totalorder %s27, 1
      %p144 = por %p142, %p143
      %p146 = scmp.ne.s32.totalorder %s129, %s145
      %p147 = scmp.eq.s32.totalorder %s27, 0
      %p148 = por %p146, %p147
      %p149 = scmp.le.s32.totalorder 1, %s21
      %p150 = scmp.lt.s32.totalorder %s21, 3
      %p151 = pnand %p149, %p150
      %p152 = pneg %p151
      // Predicated region
      $region9: #{tpu_custom_call.1} parent=5 // pred_check
        _
      $region10: #{tpu_custom_call.1} parent=5 // pred_check_branch
        %154 = sbr.rel (%p151) target = $region12
      $region11: #{tpu_custom_call.1} parent=5 // pred_region
        %s155 = ssub.s32 %s21, 1
        // Predicated region
        $region13: #{tpu_custom_call.1} parent=11 // pred_check
          %p156 = pneg %p68
        $region14: #{tpu_custom_call.1} parent=11 // pred_check_branch
          %158 = sbr.rel (%p156) target = $region16
        $region15: #{tpu_custom_call.1} parent=11 // pred_region
          %s160 = ssub.s32 256, 256
          %161 = vsyncadd [#allocation6], %s160
          %s162 = sshll.u32 [#allocation5], 4
          %s163 = int_to_ptr.vmem [resolvable:$true] %s162
          %168 = dma.hbm_to_vmem [thread:$0]  %s1, 256, %s163, [#allocation6], 128, 128, 8
        $region16: #{tpu_custom_call.1} parent=11 // pred_fallthru
          _
        // Predicated region
        $region17: #{tpu_custom_call.1} parent=11 // pred_check
          %p169 = pneg %p89
        $region18: #{tpu_custom_call.1} parent=11 // pred_check_branch
          %171 = sbr.rel (%p169) target = $region20
        $region19: #{tpu_custom_call.1} parent=11 // pred_region
          %s173 = ssub.s32 256, 256
          %174 = vsyncadd [#allocation6], %s173
          %s175 = sshll.u32 [#allocation7], 4
          %s176 = int_to_ptr.vmem [resolvable:$true] %s175
          %181 = dma.hbm_to_vmem [thread:$0]  %s2, 256, %s176, [#allocation6], 128, 128, 8
        $region20: #{tpu_custom_call.1} parent=11 // pred_fallthru
          _
      $region12: #{tpu_custom_call.1} parent=5 // pred_fallthru
        _
      %p182 = scmp.lt.s32.totalorder %s21, 2
      // Predicated region
      $region21: #{tpu_custom_call.1} parent=5 // pred_check
        %p183 = pneg %p182
      $region22: #{tpu_custom_call.1} parent=5 // pred_check_branch
        %185 = sbr.rel (%p183) target = $region24
      $region23: #{tpu_custom_call.1} parent=5 // pred_region
        // Predicated region
        $region25: #{tpu_custom_call.1} parent=23 // pred_check
          %p186 = pneg %p41
        $region26: #{tpu_custom_call.1} parent=23 // pred_check_branch
          %188 = sbr.rel (%p186) target = $region28
        $region27: #{tpu_custom_call.1} parent=23 // pred_region
          %s189 = sand.u32 %s31, 1
          %s190 = scalar_lea.sflag [#allocation3], %s189
          %s191 = sand.u32 %s31, 1
          %s192 = smul.addr %s191, 8
          %s193 = scalar_lea.vmem [#allocation2], %s192
          %s195 = ssub.s32 128, 128
          %196 = vsyncadd %s190, %s195
          %s197 = smul.addr %s21, 128
          %s198 = scalar_lea.hbm %s0, %s197
          %s200 = sshll.u32 %s193, 4
          %s201 = int_to_ptr.vmem [resolvable:$true] %s200
          %203 = dma.hbm_to_vmem [thread:$0]  %s198, 128, %s201, %s190
        $region28: #{tpu_custom_call.1} parent=23 // pred_fallthru
          _
      $region24: #{tpu_custom_call.1} parent=5 // pred_fallthru
        _
      %p204 = scmp.le.s32.totalorder 1, %s21
      %p205 = scmp.lt.s32.totalorder %s21, 3
      %p206 = pnand %p204, %p205
      %p207 = pneg %p206
      // Predicated region
      $region29: #{tpu_custom_call.1} parent=5 // pred_check
        _
      $region30: #{tpu_custom_call.1} parent=5 // pred_check_branch
        %209 = sbr.rel (%p206) target = $region32
      $region31: #{tpu_custom_call.1} parent=5 // pred_region
        %s210 = ssub.s32 %s21, 1
        %s211 = sand.u32 %s34, 1
        %s212 = scalar_lea.sflag [#allocation3], %s211
        %s213 = sand.u32 %s34, 1
        %s214 = smul.addr %s213, 8
        %s215 = scalar_lea.vmem [#allocation2], %s214
        // Predicated region
        $region33: #{tpu_custom_call.1} parent=31 // pred_check
          %p216 = pneg %p47
        $region34: #{tpu_custom_call.1} parent=31 // pred_check_branch
          %218 = sbr.rel (%p216) target = $region36
        $region35: #{tpu_custom_call.1} parent=31 // pred_region
          %219 = dma.done %s212, 128
        $region36: #{tpu_custom_call.1} parent=31 // pred_fallthru
          _
        // Predicated region
        $region37: #{tpu_custom_call.1} parent=31 // pred_check
          %p220 = pneg %p68
        $region38: #{tpu_custom_call.1} parent=31 // pred_check_branch
          %222 = sbr.rel (%p220) target = $region40
        $region39: #{tpu_custom_call.1} parent=31 // pred_region
          %223 = dma.done [#allocation6], 256
        $region40: #{tpu_custom_call.1} parent=31 // pred_fallthru
          _
        // Predicated region
        $region41: #{tpu_custom_call.1} parent=31 // pred_check
          %p224 = pneg %p89
        $region42: #{tpu_custom_call.1} parent=31 // pred_check_branch
          %226 = sbr.rel (%p224) target = $region44
        $region43: #{tpu_custom_call.1} parent=31 // pred_region
          %227 = dma.done [#allocation6], 256
        $region44: #{tpu_custom_call.1} parent=31 // pred_fallthru
          _
        %s228 = sand.u32 %s34, 1
        %s229 = scalar_lea.sflag [#allocation3], %s228
        %s230 = sand.u32 %s34, 1
        %s231 = smul.addr %s230, 8
        %s232 = scalar_lea.vmem [#allocation2], %s231
        %p233 = pneg %p47
        %p234 = pneg %p44
        %p235 = pneg %p68
        %p236 = pneg %p65
        %p237 = pneg %p89
        %p238 = pneg %p86
        %p239 = pneg %p115
        %p240 = pneg %p112
        %s241 = sand.u32 %s102, 1
        %s242 = scalar_lea.sflag [#allocation4], %s241
        %s243 = sand.u32 %s102, 1
        %s244 = smul.addr %s243, 8
        %s245 = scalar_lea.vmem [#allocation8], %s244
        %p246 = pneg %p141
        %p247 = pneg %p138
        %s248 = sand.u32 %s128, 1
        %s249 = scalar_lea.sflag [#allocation10], %s248
        %s250 = sand.u32 %s128, 1
        %s251 = smul.addr %s250, 8
        %s252 = scalar_lea.vmem [#allocation9], %s251
        %v253 = vld [vmem:[%s215] sm:$0xff]
        %v254 = vld [vmem:[#allocation5] sm:$0xff]
        %v255 = vld [vmem:[#allocation5 + $0x8] sm:$0xff]
        %vm256 = vcmask 130048
        %v258 = vsel %vm256, %v253, 0
        %260 = vmatprep.subr.mxu0 0.0
        %261 = vmatpush1.msra.mxu0 0.0
        %262 = vmatprep.subr.mxu0 0.0
        %263 = vmatpush1.msra.mxu0 0.0
        %264 = vmatprep.subr.mxu0 0.0
        %265 = vmatpush1.msra.mxu0 0.0
        %266 = vmatprep.subr.mxu0 0.0
        %267 = vmatpush1.msra.mxu0 0.0
        %268 = vmatprep.subr.mxu0 0.0
        %269 = vmatpush1.msra.mxu0 0.0
        %270 = vmatprep.subr.mxu0 0.0
        %271 = vmatpush1.msra.mxu0 0.0
        %272 = vmatprep.subr.mxu0 0.0
        %273 = vmatpush1.msra.mxu0 0.0
        %274 = vmatprep.subr.mxu0 0.0
        %275 = vmatpush1.msra.mxu0 0.0
        %276 = vmatprep.subr.mxu0 0.0
        %277 = vmatpush1.msra.mxu0 0.0
        %278 = vmatprep.subr.mxu0 0.0
        %279 = vmatpush1.msra.mxu0 0.0
        %280 = vmatprep.subr.mxu0 0.0
        %281 = vmatpush1.msra.mxu0 0.0
        %282 = vmatprep.subr.mxu0 0.0
        %283 = vmatpush1.msra.mxu0 0.0
        %284 = vmatprep.subr.mxu0 0.0
        %285 = vmatpush1.msra.mxu0 0.0
        %286 = vmatprep.subr.mxu0 0.0
        %287 = vmatpush1.msra.mxu0 0.0
        %288 = vmatprep.subr.mxu0 0.0
        %289 = vmatpush1.msra.mxu0 %v255
        %290 = vmatprep.subr.mxu0 0.0
        %291 = vmatpush1.msra.mxu0 %v254
        %292 = vmatprep.subr.mxu0 0.0
        %293 = vmatpush2.msra.mxu0 0.0
        %294 = vmatprep.subr.mxu0 0.0
        %295 = vmatpush2.msra.mxu0 0.0
        %296 = vmatprep.subr.mxu0 0.0
        %297 = vmatpush2.msra.mxu0 0.0
        %298 = vmatprep.subr.mxu0 0.0
        %299 = vmatpush2.msra.mxu0 0.0
        %300 = vmatprep.subr.mxu0 0.0
        %301 = vmatpush2.msra.mxu0 0.0
        %302 = vmatprep.subr.mxu0 0.0
        %303 = vmatpush2.msra.mxu0 0.0
        %304 = vmatprep.subr.mxu0 0.0
        %305 = vmatpush2.msra.mxu0 0.0
        %306 = vmatprep.subr.mxu0 0.0
        %307 = vmatpush2.msra.mxu0 0.0
        %308 = vmatprep.subr.mxu0 0.0
        %309 = vmatpush2.msra.mxu0 0.0
        %310 = vmatprep.subr.mxu0 0.0
        %311 = vmatpush2.msra.mxu0 0.0
        %312 = vmatprep.subr.mxu0 0.0
        %313 = vmatpush2.msra.mxu0 0.0
        %314 = vmatprep.subr.mxu0 0.0
        %315 = vmatpush2.msra.mxu0 0.0
        %316 = vmatprep.subr.mxu0 0.0
        %317 = vmatpush2.msra.mxu0 0.0
        %318 = vmatprep.subr.mxu0 0.0
        %319 = vmatpush2.msra.mxu0 0.0
        %320 = vmatprep.subr.mxu0 0.0
        %321 = vmatpush2.msra.mxu0 0.0
        %322 = vmatprep.subr.mxu0 0.0
        %323 = vmatpush2.msra.mxu0 0.0
        %324 = vmatprep.mubr.f32.mxu0 0.0
        %325 = vmatmul.mubr.f32.gmra.mxu0 %v258
        %v326 = vpop.f32.mrf.mxu0
        %v327 = vadd.f32 0.0, %v326
        %v328 = vpop.f32.mrf.mxu0
        %329 = vdwg.mxu0
        %v330 = vld [vmem:[#allocation7] sm:$0xff]
        %v331 = vld [vmem:[#allocation7 + $0x8] sm:$0xff]
        %332 = vmatprep.subr.mxu0 0.0
        %333 = vmatpush1.msra.mxu0 0.0
        %334 = vmatprep.subr.mxu0 0.0
        %335 = vmatpush1.msra.mxu0 0.0
        %336 = vmatprep.subr.mxu0 0.0
        %337 = vmatpush1.msra.mxu0 0.0
        %338 = vmatprep.subr.mxu0 0.0
        %339 = vmatpush1.msra.mxu0 0.0
        %340 = vmatprep.subr.mxu0 0.0
        %341 = vmatpush1.msra.mxu0 0.0
        %342 = vmatprep.subr.mxu0 0.0
        %343 = vmatpush1.msra.mxu0 0.0
        %344 = vmatprep.subr.mxu0 0.0
        %345 = vmatpush1.msra.mxu0 0.0
        %346 = vmatprep.subr.mxu0 0.0
        %347 = vmatpush1.msra.mxu0 0.0
        %348 = vmatprep.subr.mxu0 0.0
        %349 = vmatpush1.msra.mxu0 0.0
        %350 = vmatprep.subr.mxu0 0.0
        %351 = vmatpush1.msra.mxu0 0.0
        %352 = vmatprep.subr.mxu0 0.0
        %353 = vmatpush1.msra.mxu0 0.0
        %354 = vmatprep.subr.mxu0 0.0
        %355 = vmatpush1.msra.mxu0 0.0
        %356 = vmatprep.subr.mxu0 0.0
        %357 = vmatpush1.msra.mxu0 0.0
        %358 = vmatprep.subr.mxu0 0.0
        %359 = vmatpush1.msra.mxu0 0.0
        %360 = vmatprep.subr.mxu0 0.0
        %361 = vmatpush1.msra.mxu0 %v331
        %362 = vmatprep.subr.mxu0 0.0
        %363 = vmatpush1.msra.mxu0 %v330
        %364 = vmatprep.subr.mxu0 0.0
        %365 = vmatpush2.msra.mxu0 0.0
        %366 = vmatprep.subr.mxu0 0.0
        %367 = vmatpush2.msra.mxu0 0.0
        %368 = vmatprep.subr.mxu0 0.0
        %369 = vmatpush2.msra.mxu0 0.0
        %370 = vmatprep.subr.mxu0 0.0
        %371 = vmatpush2.msra.mxu0 0.0
        %372 = vmatprep.subr.mxu0 0.0
        %373 = vmatpush2.msra.mxu0 0.0
        %374 = vmatprep.subr.mxu0 0.0
        %375 = vmatpush2.msra.mxu0 0.0
        %376 = vmatprep.subr.mxu0 0.0
        %377 = vmatpush2.msra.mxu0 0.0
        %378 = vmatprep.subr.mxu0 0.0
        %379 = vmatpush2.msra.mxu0 0.0
        %380 = vmatprep.subr.mxu0 0.0
        %381 = vmatpush2.msra.mxu0 0.0
        %382 = vmatprep.subr.mxu0 0.0
        %383 = vmatpush2.msra.mxu0 0.0
        %384 = vmatprep.subr.mxu0 0.0
        %385 = vmatpush2.msra.mxu0 0.0
        %386 = vmatprep.subr.mxu0 0.0
        %387 = vmatpush2.msra.mxu0 0.0
        %388 = vmatprep.subr.mxu0 0.0
        %389 = vmatpush2.msra.mxu0 0.0
        %390 = vmatprep.subr.mxu0 0.0
        %391 = vmatpush2.msra.mxu0 0.0
        %392 = vmatprep.subr.mxu0 0.0
        %393 = vmatpush2.msra.mxu0 0.0
        %394 = vmatprep.subr.mxu0 0.0
        %395 = vmatpush2.msra.mxu0 0.0
        %396 = vmatprep.mubr.f32.mxu0 0.0
        %397 = vmatmul.mubr.f32.gmra.mxu0 %v258
        %v398 = vpop.f32.mrf.mxu0
        %v399 = vadd.f32 0.0, %v398
        %v400 = vpop.f32.mrf.mxu0
        %401 = vdwg.mxu0
        %vm402 = vcmp.gt.f32.partialorder %v327, 0.0
        %v403 = vmul.f32 %v327, 0.2
        %v404 = vsel %vm402, %v327, %v403
        %vm405 = vcmask 261120
        %406 = vst.msk [vmem:[%s245] sm:$0xff] %vm405, %v404
        %vm407 = vcmp.gt.f32.partialorder %v399, 0.0
        %v408 = vmul.f32 %v399, 0.2
        %v409 = vsel %vm407, %v399, %v408
        %410 = vst.msk [vmem:[%s252] sm:$0xff] %vm405, %v409
        %s411 = sand.u32 %s102, 1
        %s412 = scalar_lea.sflag [#allocation4], %s411
        %s413 = sand.u32 %s102, 1
        %s414 = smul.addr %s413, 8
        %s415 = scalar_lea.vmem [#allocation8], %s414
        %s416 = sand.u32 %s128, 1
        %s417 = scalar_lea.sflag [#allocation10], %s416
        %s418 = sand.u32 %s128, 1
        %s419 = smul.addr %s418, 8
        %s420 = scalar_lea.vmem [#allocation9], %s419
        // Predicated region
        $region45: #{tpu_custom_call.1} parent=31 // pred_check
          %p421 = pneg %p112
        $region46: #{tpu_custom_call.1} parent=31 // pred_check_branch
          %423 = sbr.rel (%p421) target = $region48
        $region47: #{tpu_custom_call.1} parent=31 // pred_region
          %s425 = ssub.s32 128, 128
          %426 = vsyncadd %s412, %s425
          %s427 = smul.addr %s26, 128
          %s428 = scalar_lea.hbm %s3, %s427
          %s430 = sshll.u32 %s415, 4
          %s431 = int_to_ptr.vmem [resolvable:$true] %s430
          %433 = dma.vmem_to_hbm [thread:$0]  %s431, 128, %s428, %s412
        $region48: #{tpu_custom_call.1} parent=31 // pred_fallthru
          _
        // Predicated region
        $region49: #{tpu_custom_call.1} parent=31 // pred_check
          %p434 = pneg %p138
        $region50: #{tpu_custom_call.1} parent=31 // pred_check_branch
          %436 = sbr.rel (%p434) target = $region52
        $region51: #{tpu_custom_call.1} parent=31 // pred_region
          %s438 = ssub.s32 128, 128
          %439 = vsyncadd %s417, %s438
          %s440 = smul.addr %s26, 128
          %s441 = scalar_lea.hbm %s4, %s440
          %s443 = sshll.u32 %s420, 4
          %s444 = int_to_ptr.vmem [resolvable:$true] %s443
          %446 = dma.vmem_to_hbm [thread:$0]  %s444, 128, %s441, %s417
        $region52: #{tpu_custom_call.1} parent=31 // pred_fallthru
          _
      $region32: #{tpu_custom_call.1} parent=5 // pred_fallthru
        _
      %p447 = scmp.le.s32.totalorder 2, %s21
      // Predicated region
      $region53: #{tpu_custom_call.1} parent=5 // pred_check
        %p448 = pneg %p447
      $region54: #{tpu_custom_call.1} parent=5 // pred_check_branch
        %450 = sbr.rel (%p448) target = $region56
      $region55: #{tpu_custom_call.1} parent=5 // pred_region
        %s451 = ssub.s32 %s21, 2
        // Predicated region
        $region57: #{tpu_custom_call.1} parent=55 // pred_check
          %p452 = pneg %p118
        $region58: #{tpu_custom_call.1} parent=55 // pred_check_branch
          %454 = sbr.rel (%p452) target = $region60
        $region59: #{tpu_custom_call.1} parent=55 // pred_region
          %s455 = sand.u32 %s103, 1
          %s456 = scalar_lea.sflag [#allocation4], %s455
          %s457 = sand.u32 %s103, 1
          %s458 = smul.addr %s457, 8
          %s459 = scalar_lea.vmem [#allocation8], %s458
          %460 = dma.done %s456, 128
        $region60: #{tpu_custom_call.1} parent=55 // pred_fallthru
          _
        // Predicated region
        $region61: #{tpu_custom_call.1} parent=55 // pred_check
          %p461 = pneg %p144
        $region62: #{tpu_custom_call.1} parent=55 // pred_check_branch
          %463 = sbr.rel (%p461) target = $region64
        $region63: #{tpu_custom_call.1} parent=55 // pred_region
          %s464 = sand.u32 %s129, 1
          %s465 = scalar_lea.sflag [#allocation10], %s464
          %s466 = sand.u32 %s129, 1
          %s467 = smul.addr %s466, 8
          %s468 = scalar_lea.vmem [#allocation9], %s467
          %469 = dma.done %s465, 128
        $region64: #{tpu_custom_call.1} parent=55 // pred_fallthru
          _
      $region56: #{tpu_custom_call.1} parent=5 // pred_fallthru
        _
    $region6: #{tpu_custom_call.1} parent=1 // loop_footer
      %s25 = sadd.s32 1, %s21
    $region7: #{tpu_custom_call.1} parent=1 // loop_footer_branch
      %20 = sbr.rel target = $region3
    $region8: #{tpu_custom_call.1} parent=1 // loop_exit
      _
    %470 = vsyncpa [#allocation3], 1
    %s471 = scalar_lea.sflag [#allocation3], 1
    %472 = vsyncpa %s471, 1
    %473 = vsyncpa [#allocation6], 1
    %474 = vsyncpa [#allocation4], 1
    %s475 = scalar_lea.sflag [#allocation4], 1
    %476 = vsyncpa %s475, 1
    %477 = vsyncpa [#allocation10], 1
    %s478 = scalar_lea.sflag [#allocation10], 1
    %479 = vsyncpa %s478, 1

</llo_original>
